<compile_context>
chip_gen: v7x
topology: tpu7x:2x2x1
jax: 0.10.0
libtpu: 0.0.40
codegen_flags: <defaults>
</compile_context>

<pallas_src>
import jax
import jax.numpy as jnp
from jax.experimental import pallas as pl
from jax.experimental.pallas import tpu as pltpu

dim_x = 2
dim_xc = 0
dim_xe = dim_x + dim_xc      # = 2
HIDDEN = 8
OUT = dim_xe * dim_xe        # = 4

LANE_TILE = 512              # lanes per grid step (multiple of 128)
SUBLANE_TILE = 8             # sublane rows per grid step (multiple of 8)
ROWS_PER_TILE = LANE_TILE * SUBLANE_TILE   # 4096 batch rows per grid step


def vnn_kernel(x_ref, w1_ref, b1_ref, w2_ref, b2_ref, o_ref):
    # x_ref : (dim_xe, SUBLANE_TILE, LANE_TILE)  VMEM, batch dense on (sublane, lane)
    # w1_ref: (dim_xe*HIDDEN,) SMEM, row-major [in, out]
    # b1_ref: (HIDDEN,)        SMEM
    # w2_ref: (HIDDEN*OUT,)    SMEM, row-major [in, out]
    # b2_ref: (OUT,)           SMEM
    # o_ref : (OUT, SUBLANE_TILE, LANE_TILE)     VMEM
    xs = [x_ref[k] for k in range(dim_xe)]          # dense (S, L) slabs

    # Layer 1: tiny GEMM unrolled as VPU broadcast-FMAs; tanh on the EUP.
    h = []
    for j in range(HIDDEN):
        acc = xs[0] * w1_ref[0 * HIDDEN + j]
        for k in range(1, dim_xe):
            acc = acc + xs[k] * w1_ref[k * HIDDEN + j]
        h.append(jnp.tanh(acc + b1_ref[j]))

    # Layer 2: unrolled VPU FMAs; one dense (S, L) store per output feature.
    for i in range(OUT):
        acc = h[0] * w2_ref[0 * OUT + i]
        for k in range(1, HIDDEN):
            acc = acc + h[k] * w2_ref[k * OUT + i]
        o_ref[i] = (acc + b2_ref[i]).astype(o_ref.dtype)


def vnn_forward(x, w1, b1, w2, b2):
    """x: (N, dim_xe) f32. w1: (dim_xe, HIDDEN), b1: (HIDDEN,),
    w2: (HIDDEN, OUT), b2: (OUT,). Returns (N, dim_xe, dim_xe)."""
    N = x.shape[0]
    n_pad = (-N) % ROWS_PER_TILE
    Np = N + n_pad
    x_pad = jnp.pad(x, ((0, n_pad), (0, 0)))

    R = Np // LANE_TILE
    # Batch-on-lanes layout: feature-major, batch spread over (R, LANE_TILE).
    x_t = x_pad.T.reshape(dim_xe, R, LANE_TILE)

    grid = (R // SUBLANE_TILE,)

    out_t = pl.pallas_call(
        vnn_kernel,
        out_shape=jax.ShapeDtypeStruct((OUT, R, LANE_TILE), x.dtype),
        grid_spec=pl.GridSpec(
            grid=grid,
            in_specs=[
                pl.BlockSpec((dim_xe, SUBLANE_TILE, LANE_TILE),
                             lambda i: (0, i, 0)),
                pl.BlockSpec(memory_space=pltpu.MemorySpace.SMEM),
                pl.BlockSpec(memory_space=pltpu.MemorySpace.SMEM),
                pl.BlockSpec(memory_space=pltpu.MemorySpace.SMEM),
                pl.BlockSpec(memory_space=pltpu.MemorySpace.SMEM),
            ],
            out_specs=pl.BlockSpec((OUT, SUBLANE_TILE, LANE_TILE),
                                   lambda i: (0, i, 0)),
        ),
        compiler_params=pltpu.CompilerParams(
            dimension_semantics=("parallel",),
            vmem_limit_bytes=32 * 1024 * 1024,
        ),
    )(x_t, w1.reshape(-1), b1.reshape(-1), w2.reshape(-1), b2.reshape(-1))

    # Back to row-major (N, OUT), drop padding, then v_flat.view(-1, 2, 2).
    v_flat = out_t.reshape(OUT, Np).T[:N]
    return v_flat.reshape(-1, dim_xe, dim_xe)


def init_params(key):
    # Deterministic init mimicking nn.Linear default (uniform +/- 1/sqrt(fan_in)).
    k1, k2, k3, k4 = jax.random.split(key, 4)
    lim1 = 1.0 / jnp.sqrt(jnp.float32(dim_xe))
    lim2 = 1.0 / jnp.sqrt(jnp.float32(HIDDEN))
    w1 = jax.random.uniform(k1, (dim_xe, HIDDEN), jnp.float32, -lim1, lim1)
    b1 = jax.random.uniform(k2, (HIDDEN,), jnp.float32, -lim1, lim1)
    w2 = jax.random.uniform(k3, (HIDDEN, OUT), jnp.float32, -lim2, lim2)
    b2 = jax.random.uniform(k4, (OUT,), jnp.float32, -lim2, lim2)
    return w1, b1, w2, b2


if __name__ == "__main__":
    key = jax.random.PRNGKey(0)
    k_x, k_p = jax.random.split(key)
    w1, b1, w2, b2 = init_params(k_p)

    # One multi-step grid batch and one ragged batch (exercises padding path).
    for N in (8192, 37):
        kx = jax.random.fold_in(k_x, N)
        x = jax.random.normal(kx, (N, dim_xe), jnp.float32)

        v = jax.block_until_ready(vnn_forward(x, w1, b1, w2, b2))

        # Pure-JAX reference (f32 precision) of the same math.
        hi = jax.lax.Precision.HIGHEST
        h_ref = jnp.tanh(jnp.dot(x, w1, precision=hi) + b1)
        ref = (jnp.dot(h_ref, w2, precision=hi) + b2).reshape(-1, dim_xe, dim_xe)

        assert v.shape == (N, dim_xe, dim_xe)
        assert jnp.allclose(v, ref, atol=1e-5, rtol=1e-5), float(
            jnp.max(jnp.abs(v - ref)))

    print("KERNEL_OK")
</pallas_src>

<mosaic_0001>
module attributes {stable_mosaic.version = 11 : i64} {
  func.func @vnn_kernel(%arg0: i32, %arg1: memref<2x8x512xf32, #tpu.memory_space<vmem>>, %arg2: memref<16xf32, #tpu.memory_space<smem>>, %arg3: memref<8xf32, #tpu.memory_space<smem>>, %arg4: memref<32xf32, #tpu.memory_space<smem>>, %arg5: memref<4xf32, #tpu.memory_space<smem>>, %arg6: memref<4x8x512xf32, #tpu.memory_space<vmem>>) attributes {dimension_semantics = [#tpu.dimension_semantics<parallel>], iteration_bounds = array<i64: 2>, scalar_prefetch = 0 : i64, scratch_operands = 0 : i64, tpu.core_type = #tpu.core_type<tc>, window_params = [{transform_indices = @transform_0, window_bounds = array<i64: 2, 8, 512>}, {transform_indices = @transform_1, window_bounds = array<i64: 16>}, {transform_indices = @transform_2, window_bounds = array<i64: 8>}, {transform_indices = @transform_3, window_bounds = array<i64: 32>}, {transform_indices = @transform_4, window_bounds = array<i64: 4>}, {transform_indices = @transform_5, window_bounds = array<i64: 4, 8, 512>}]} {
    %c0 = arith.constant 0 : index
    %c0_0 = arith.constant 0 : index
    %c0_1 = arith.constant 0 : index
    %0 = vector.load %arg1[%c0, %c0_0, %c0_1] : memref<2x8x512xf32, #tpu.memory_space<vmem>>, vector<1x8x512xf32>
    %1 = vector.shape_cast %0 : vector<1x8x512xf32> to vector<8x512xf32>
    %c1 = arith.constant 1 : index
    %c0_2 = arith.constant 0 : index
    %c0_3 = arith.constant 0 : index
    %2 = vector.load %arg1[%c1, %c0_2, %c0_3] : memref<2x8x512xf32, #tpu.memory_space<vmem>>, vector<1x8x512xf32>
    %3 = vector.shape_cast %2 : vector<1x8x512xf32> to vector<8x512xf32>
    %c0_4 = arith.constant 0 : index
    %4 = memref.load %arg2[%c0_4] : memref<16xf32, #tpu.memory_space<smem>>
    %5 = vector.broadcast %4 : f32 to vector<8x512xf32>
    %6 = arith.mulf %1, %5 : vector<8x512xf32>
    %c8 = arith.constant 8 : index
    %7 = memref.load %arg2[%c8] : memref<16xf32, #tpu.memory_space<smem>>
    %8 = vector.broadcast %7 : f32 to vector<8x512xf32>
    %9 = arith.mulf %3, %8 : vector<8x512xf32>
    %10 = arith.addf %6, %9 : vector<8x512xf32>
    %c0_5 = arith.constant 0 : index
    %11 = memref.load %arg3[%c0_5] : memref<8xf32, #tpu.memory_space<smem>>
    %12 = vector.broadcast %11 : f32 to vector<8x512xf32>
    %13 = arith.addf %10, %12 : vector<8x512xf32>
    %14 = math.tanh %13 : vector<8x512xf32>
    %c1_6 = arith.constant 1 : index
    %15 = memref.load %arg2[%c1_6] : memref<16xf32, #tpu.memory_space<smem>>
    %16 = vector.broadcast %15 : f32 to vector<8x512xf32>
    %17 = arith.mulf %1, %16 : vector<8x512xf32>
    %c9 = arith.constant 9 : index
    %18 = memref.load %arg2[%c9] : memref<16xf32, #tpu.memory_space<smem>>
    %19 = vector.broadcast %18 : f32 to vector<8x512xf32>
    %20 = arith.mulf %3, %19 : vector<8x512xf32>
    %21 = arith.addf %17, %20 : vector<8x512xf32>
    %c1_7 = arith.constant 1 : index
    %22 = memref.load %arg3[%c1_7] : memref<8xf32, #tpu.memory_space<smem>>
    %23 = vector.broadcast %22 : f32 to vector<8x512xf32>
    %24 = arith.addf %21, %23 : vector<8x512xf32>
    %25 = math.tanh %24 : vector<8x512xf32>
    %c2 = arith.constant 2 : index
    %26 = memref.load %arg2[%c2] : memref<16xf32, #tpu.memory_space<smem>>
    %27 = vector.broadcast %26 : f32 to vector<8x512xf32>
    %28 = arith.mulf %1, %27 : vector<8x512xf32>
    %c10 = arith.constant 10 : index
    %29 = memref.load %arg2[%c10] : memref<16xf32, #tpu.memory_space<smem>>
    %30 = vector.broadcast %29 : f32 to vector<8x512xf32>
    %31 = arith.mulf %3, %30 : vector<8x512xf32>
    %32 = arith.addf %28, %31 : vector<8x512xf32>
    %c2_8 = arith.constant 2 : index
    %33 = memref.load %arg3[%c2_8] : memref<8xf32, #tpu.memory_space<smem>>
    %34 = vector.broadcast %33 : f32 to vector<8x512xf32>
    %35 = arith.addf %32, %34 : vector<8x512xf32>
    %36 = math.tanh %35 : vector<8x512xf32>
    %c3 = arith.constant 3 : index
    %37 = memref.load %arg2[%c3] : memref<16xf32, #tpu.memory_space<smem>>
    %38 = vector.broadcast %37 : f32 to vector<8x512xf32>
    %39 = arith.mulf %1, %38 : vector<8x512xf32>
    %c11 = arith.constant 11 : index
    %40 = memref.load %arg2[%c11] : memref<16xf32, #tpu.memory_space<smem>>
    %41 = vector.broadcast %40 : f32 to vector<8x512xf32>
    %42 = arith.mulf %3, %41 : vector<8x512xf32>
    %43 = arith.addf %39, %42 : vector<8x512xf32>
    %c3_9 = arith.constant 3 : index
    %44 = memref.load %arg3[%c3_9] : memref<8xf32, #tpu.memory_space<smem>>
    %45 = vector.broadcast %44 : f32 to vector<8x512xf32>
    %46 = arith.addf %43, %45 : vector<8x512xf32>
    %47 = math.tanh %46 : vector<8x512xf32>
    %c4 = arith.constant 4 : index
    %48 = memref.load %arg2[%c4] : memref<16xf32, #tpu.memory_space<smem>>
    %49 = vector.broadcast %48 : f32 to vector<8x512xf32>
    %50 = arith.mulf %1, %49 : vector<8x512xf32>
    %c12 = arith.constant 12 : index
    %51 = memref.load %arg2[%c12] : memref<16xf32, #tpu.memory_space<smem>>
    %52 = vector.broadcast %51 : f32 to vector<8x512xf32>
    %53 = arith.mulf %3, %52 : vector<8x512xf32>
    %54 = arith.addf %50, %53 : vector<8x512xf32>
    %c4_10 = arith.constant 4 : index
    %55 = memref.load %arg3[%c4_10] : memref<8xf32, #tpu.memory_space<smem>>
    %56 = vector.broadcast %55 : f32 to vector<8x512xf32>
    %57 = arith.addf %54, %56 : vector<8x512xf32>
    %58 = math.tanh %57 : vector<8x512xf32>
    %c5 = arith.constant 5 : index
    %59 = memref.load %arg2[%c5] : memref<16xf32, #tpu.memory_space<smem>>
    %60 = vector.broadcast %59 : f32 to vector<8x512xf32>
    %61 = arith.mulf %1, %60 : vector<8x512xf32>
    %c13 = arith.constant 13 : index
    %62 = memref.load %arg2[%c13] : memref<16xf32, #tpu.memory_space<smem>>
    %63 = vector.broadcast %62 : f32 to vector<8x512xf32>
    %64 = arith.mulf %3, %63 : vector<8x512xf32>
    %65 = arith.addf %61, %64 : vector<8x512xf32>
    %c5_11 = arith.constant 5 : index
    %66 = memref.load %arg3[%c5_11] : memref<8xf32, #tpu.memory_space<smem>>
    %67 = vector.broadcast %66 : f32 to vector<8x512xf32>
    %68 = arith.addf %65, %67 : vector<8x512xf32>
    %69 = math.tanh %68 : vector<8x512xf32>
    %c6 = arith.constant 6 : index
    %70 = memref.load %arg2[%c6] : memref<16xf32, #tpu.memory_space<smem>>
    %71 = vector.broadcast %70 : f32 to vector<8x512xf32>
    %72 = arith.mulf %1, %71 : vector<8x512xf32>
    %c14 = arith.constant 14 : index
    %73 = memref.load %arg2[%c14] : memref<16xf32, #tpu.memory_space<smem>>
    %74 = vector.broadcast %73 : f32 to vector<8x512xf32>
    %75 = arith.mulf %3, %74 : vector<8x512xf32>
    %76 = arith.addf %72, %75 : vector<8x512xf32>
    %c6_12 = arith.constant 6 : index
    %77 = memref.load %arg3[%c6_12] : memref<8xf32, #tpu.memory_space<smem>>
    %78 = vector.broadcast %77 : f32 to vector<8x512xf32>
    %79 = arith.addf %76, %78 : vector<8x512xf32>
    %80 = math.tanh %79 : vector<8x512xf32>
    %c7 = arith.constant 7 : index
    %81 = memref.load %arg2[%c7] : memref<16xf32, #tpu.memory_space<smem>>
    %82 = vector.broadcast %81 : f32 to vector<8x512xf32>
    %83 = arith.mulf %1, %82 : vector<8x512xf32>
    %c15 = arith.constant 15 : index
    %84 = memref.load %arg2[%c15] : memref<16xf32, #tpu.memory_space<smem>>
    %85 = vector.broadcast %84 : f32 to vector<8x512xf32>
    %86 = arith.mulf %3, %85 : vector<8x512xf32>
    %87 = arith.addf %83, %86 : vector<8x512xf32>
    %c7_13 = arith.constant 7 : index
    %88 = memref.load %arg3[%c7_13] : memref<8xf32, #tpu.memory_space<smem>>
    %89 = vector.broadcast %88 : f32 to vector<8x512xf32>
    %90 = arith.addf %87, %89 : vector<8x512xf32>
    %91 = math.tanh %90 : vector<8x512xf32>
    %c0_14 = arith.constant 0 : index
    %92 = memref.load %arg4[%c0_14] : memref<32xf32, #tpu.memory_space<smem>>
    %93 = vector.broadcast %92 : f32 to vector<8x512xf32>
    %94 = arith.mulf %14, %93 : vector<8x512xf32>
    %c4_15 = arith.constant 4 : index
    %95 = memref.load %arg4[%c4_15] : memref<32xf32, #tpu.memory_space<smem>>
    %96 = vector.broadcast %95 : f32 to vector<8x512xf32>
    %97 = arith.mulf %25, %96 : vector<8x512xf32>
    %98 = arith.addf %94, %97 : vector<8x512xf32>
    %c8_16 = arith.constant 8 : index
    %99 = memref.load %arg4[%c8_16] : memref<32xf32, #tpu.memory_space<smem>>
    %100 = vector.broadcast %99 : f32 to vector<8x512xf32>
    %101 = arith.mulf %36, %100 : vector<8x512xf32>
    %102 = arith.addf %98, %101 : vector<8x512xf32>
    %c12_17 = arith.constant 12 : index
    %103 = memref.load %arg4[%c12_17] : memref<32xf32, #tpu.memory_space<smem>>
    %104 = vector.broadcast %103 : f32 to vector<8x512xf32>
    %105 = arith.mulf %47, %104 : vector<8x512xf32>
    %106 = arith.addf %102, %105 : vector<8x512xf32>
    %c16 = arith.constant 16 : index
    %107 = memref.load %arg4[%c16] : memref<32xf32, #tpu.memory_space<smem>>
    %108 = vector.broadcast %107 : f32 to vector<8x512xf32>
    %109 = arith.mulf %58, %108 : vector<8x512xf32>
    %110 = arith.addf %106, %109 : vector<8x512xf32>
    %c20 = arith.constant 20 : index
    %111 = memref.load %arg4[%c20] : memref<32xf32, #tpu.memory_space<smem>>
    %112 = vector.broadcast %111 : f32 to vector<8x512xf32>
    %113 = arith.mulf %69, %112 : vector<8x512xf32>
    %114 = arith.addf %110, %113 : vector<8x512xf32>
    %c24 = arith.constant 24 : index
    %115 = memref.load %arg4[%c24] : memref<32xf32, #tpu.memory_space<smem>>
    %116 = vector.broadcast %115 : f32 to vector<8x512xf32>
    %117 = arith.mulf %80, %116 : vector<8x512xf32>
    %118 = arith.addf %114, %117 : vector<8x512xf32>
    %c28 = arith.constant 28 : index
    %119 = memref.load %arg4[%c28] : memref<32xf32, #tpu.memory_space<smem>>
    %120 = vector.broadcast %119 : f32 to vector<8x512xf32>
    %121 = arith.mulf %91, %120 : vector<8x512xf32>
    %122 = arith.addf %118, %121 : vector<8x512xf32>
    %c0_18 = arith.constant 0 : index
    %123 = memref.load %arg5[%c0_18] : memref<4xf32, #tpu.memory_space<smem>>
    %124 = vector.broadcast %123 : f32 to vector<8x512xf32>
    %125 = arith.addf %122, %124 : vector<8x512xf32>
    %c0_19 = arith.constant 0 : index
    %c0_20 = arith.constant 0 : index
    %c0_21 = arith.constant 0 : index
    %126 = vector.load %arg6[%c0_19, %c0_20, %c0_21] : memref<4x8x512xf32, #tpu.memory_space<vmem>>, vector<1x8x512xf32>
    %127 = vector.shape_cast %126 : vector<1x8x512xf32> to vector<8x512xf32>
    %128 = vector.shape_cast %125 : vector<8x512xf32> to vector<1x8x512xf32>
    tpu.vector_store %arg6[%c0_19, %c0_20, %c0_21], %128 {strides = array<i32>} : memref<4x8x512xf32, #tpu.memory_space<vmem>>, vector<1x8x512xf32>,
    %c1_22 = arith.constant 1 : index
    %129 = memref.load %arg4[%c1_22] : memref<32xf32, #tpu.memory_space<smem>>
    %130 = vector.broadcast %129 : f32 to vector<8x512xf32>
    %131 = arith.mulf %14, %130 : vector<8x512xf32>
    %c5_23 = arith.constant 5 : index
    %132 = memref.load %arg4[%c5_23] : memref<32xf32, #tpu.memory_space<smem>>
    %133 = vector.broadcast %132 : f32 to vector<8x512xf32>
    %134 = arith.mulf %25, %133 : vector<8x512xf32>
    %135 = arith.addf %131, %134 : vector<8x512xf32>
    %c9_24 = arith.constant 9 : index
    %136 = memref.load %arg4[%c9_24] : memref<32xf32, #tpu.memory_space<smem>>
    %137 = vector.broadcast %136 : f32 to vector<8x512xf32>
    %138 = arith.mulf %36, %137 : vector<8x512xf32>
    %139 = arith.addf %135, %138 : vector<8x512xf32>
    %c13_25 = arith.constant 13 : index
    %140 = memref.load %arg4[%c13_25] : memref<32xf32, #tpu.memory_space<smem>>
    %141 = vector.broadcast %140 : f32 to vector<8x512xf32>
    %142 = arith.mulf %47, %141 : vector<8x512xf32>
    %143 = arith.addf %139, %142 : vector<8x512xf32>
    %c17 = arith.constant 17 : index
    %144 = memref.load %arg4[%c17] : memref<32xf32, #tpu.memory_space<smem>>
    %145 = vector.broadcast %144 : f32 to vector<8x512xf32>
    %146 = arith.mulf %58, %145 : vector<8x512xf32>
    %147 = arith.addf %143, %146 : vector<8x512xf32>
    %c21 = arith.constant 21 : index
    %148 = memref.load %arg4[%c21] : memref<32xf32, #tpu.memory_space<smem>>
    %149 = vector.broadcast %148 : f32 to vector<8x512xf32>
    %150 = arith.mulf %69, %149 : vector<8x512xf32>
    %151 = arith.addf %147, %150 : vector<8x512xf32>
    %c25 = arith.constant 25 : index
    %152 = memref.load %arg4[%c25] : memref<32xf32, #tpu.memory_space<smem>>
    %153 = vector.broadcast %152 : f32 to vector<8x512xf32>
    %154 = arith.mulf %80, %153 : vector<8x512xf32>
    %155 = arith.addf %151, %154 : vector<8x512xf32>
    %c29 = arith.constant 29 : index
    %156 = memref.load %arg4[%c29] : memref<32xf32, #tpu.memory_space<smem>>
    %157 = vector.broadcast %156 : f32 to vector<8x512xf32>
    %158 = arith.mulf %91, %157 : vector<8x512xf32>
    %159 = arith.addf %155, %158 : vector<8x512xf32>
    %c1_26 = arith.constant 1 : index
    %160 = memref.load %arg5[%c1_26] : memref<4xf32, #tpu.memory_space<smem>>
    %161 = vector.broadcast %160 : f32 to vector<8x512xf32>
    %162 = arith.addf %159, %161 : vector<8x512xf32>
    %c1_27 = arith.constant 1 : index
    %c0_28 = arith.constant 0 : index
    %c0_29 = arith.constant 0 : index
    %163 = vector.load %arg6[%c1_27, %c0_28, %c0_29] : memref<4x8x512xf32, #tpu.memory_space<vmem>>, vector<1x8x512xf32>
    %164 = vector.shape_cast %163 : vector<1x8x512xf32> to vector<8x512xf32>
    %165 = vector.shape_cast %162 : vector<8x512xf32> to vector<1x8x512xf32>
    tpu.vector_store %arg6[%c1_27, %c0_28, %c0_29], %165 {strides = array<i32>} : memref<4x8x512xf32, #tpu.memory_space<vmem>>, vector<1x8x512xf32>,
    %c2_30 = arith.constant 2 : index
    %166 = memref.load %arg4[%c2_30] : memref<32xf32, #tpu.memory_space<smem>>
    %167 = vector.broadcast %166 : f32 to vector<8x512xf32>
    %168 = arith.mulf %14, %167 : vector<8x512xf32>
    %c6_31 = arith.constant 6 : index
    %169 = memref.load %arg4[%c6_31] : memref<32xf32, #tpu.memory_space<smem>>
    %170 = vector.broadcast %169 : f32 to vector<8x512xf32>
    %171 = arith.mulf %25, %170 : vector<8x512xf32>
    %172 = arith.addf %168, %171 : vector<8x512xf32>
    %c10_32 = arith.constant 10 : index
    %173 = memref.load %arg4[%c10_32] : memref<32xf32, #tpu.memory_space<smem>>
    %174 = vector.broadcast %173 : f32 to vector<8x512xf32>
    %175 = arith.mulf %36, %174 : vector<8x512xf32>
    %176 = arith.addf %172, %175 : vector<8x512xf32>
    %c14_33 = arith.constant 14 : index
    %177 = memref.load %arg4[%c14_33] : memref<32xf32, #tpu.memory_space<smem>>
    %178 = vector.broadcast %177 : f32 to vector<8x512xf32>
    %179 = arith.mulf %47, %178 : vector<8x512xf32>
    %180 = arith.addf %176, %179 : vector<8x512xf32>
    %c18 = arith.constant 18 : index
    %181 = memref.load %arg4[%c18] : memref<32xf32, #tpu.memory_space<smem>>
    %182 = vector.broadcast %181 : f32 to vector<8x512xf32>
    %183 = arith.mulf %58, %182 : vector<8x512xf32>
    %184 = arith.addf %180, %183 : vector<8x512xf32>
    %c22 = arith.constant 22 : index
    %185 = memref.load %arg4[%c22] : memref<32xf32, #tpu.memory_space<smem>>
    %186 = vector.broadcast %185 : f32 to vector<8x512xf32>
    %187 = arith.mulf %69, %186 : vector<8x512xf32>
    %188 = arith.addf %184, %187 : vector<8x512xf32>
    %c26 = arith.constant 26 : index
    %189 = memref.load %arg4[%c26] : memref<32xf32, #tpu.memory_space<smem>>
    %190 = vector.broadcast %189 : f32 to vector<8x512xf32>
    %191 = arith.mulf %80, %190 : vector<8x512xf32>
    %192 = arith.addf %188, %191 : vector<8x512xf32>
    %c30 = arith.constant 30 : index
    %193 = memref.load %arg4[%c30] : memref<32xf32, #tpu.memory_space<smem>>
    %194 = vector.broadcast %193 : f32 to vector<8x512xf32>
    %195 = arith.mulf %91, %194 : vector<8x512xf32>
    %196 = arith.addf %192, %195 : vector<8x512xf32>
    %c2_34 = arith.constant 2 : index
    %197 = memref.load %arg5[%c2_34] : memref<4xf32, #tpu.memory_space<smem>>
    %198 = vector.broadcast %197 : f32 to vector<8x512xf32>
    %199 = arith.addf %196, %198 : vector<8x512xf32>
    %c2_35 = arith.constant 2 : index
    %c0_36 = arith.constant 0 : index
    %c0_37 = arith.constant 0 : index
    %200 = vector.load %arg6[%c2_35, %c0_36, %c0_37] : memref<4x8x512xf32, #tpu.memory_space<vmem>>, vector<1x8x512xf32>
    %201 = vector.shape_cast %200 : vector<1x8x512xf32> to vector<8x512xf32>
    %202 = vector.shape_cast %199 : vector<8x512xf32> to vector<1x8x512xf32>
    tpu.vector_store %arg6[%c2_35, %c0_36, %c0_37], %202 {strides = array<i32>} : memref<4x8x512xf32, #tpu.memory_space<vmem>>, vector<1x8x512xf32>,
    %c3_38 = arith.constant 3 : index
    %203 = memref.load %arg4[%c3_38] : memref<32xf32, #tpu.memory_space<smem>>
    %204 = vector.broadcast %203 : f32 to vector<8x512xf32>
    %205 = arith.mulf %14, %204 : vector<8x512xf32>
    %c7_39 = arith.constant 7 : index
    %206 = memref.load %arg4[%c7_39] : memref<32xf32, #tpu.memory_space<smem>>
    %207 = vector.broadcast %206 : f32 to vector<8x512xf32>
    %208 = arith.mulf %25, %207 : vector<8x512xf32>
    %209 = arith.addf %205, %208 : vector<8x512xf32>
    %c11_40 = arith.constant 11 : index
    %210 = memref.load %arg4[%c11_40] : memref<32xf32, #tpu.memory_space<smem>>
    %211 = vector.broadcast %210 : f32 to vector<8x512xf32>
    %212 = arith.mulf %36, %211 : vector<8x512xf32>
    %213 = arith.addf %209, %212 : vector<8x512xf32>
    %c15_41 = arith.constant 15 : index
    %214 = memref.load %arg4[%c15_41] : memref<32xf32, #tpu.memory_space<smem>>
    %215 = vector.broadcast %214 : f32 to vector<8x512xf32>
    %216 = arith.mulf %47, %215 : vector<8x512xf32>
    %217 = arith.addf %213, %216 : vector<8x512xf32>
    %c19 = arith.constant 19 : index
    %218 = memref.load %arg4[%c19] : memref<32xf32, #tpu.memory_space<smem>>
    %219 = vector.broadcast %218 : f32 to vector<8x512xf32>
    %220 = arith.mulf %58, %219 : vector<8x512xf32>
    %221 = arith.addf %217, %220 : vector<8x512xf32>
    %c23 = arith.constant 23 : index
    %222 = memref.load %arg4[%c23] : memref<32xf32, #tpu.memory_space<smem>>
    %223 = vector.broadcast %222 : f32 to vector<8x512xf32>
    %224 = arith.mulf %69, %223 : vector<8x512xf32>
    %225 = arith.addf %221, %224 : vector<8x512xf32>
    %c27 = arith.constant 27 : index
    %226 = memref.load %arg4[%c27] : memref<32xf32, #tpu.memory_space<smem>>
    %227 = vector.broadcast %226 : f32 to vector<8x512xf32>
    %228 = arith.mulf %80, %227 : vector<8x512xf32>
    %229 = arith.addf %225, %228 : vector<8x512xf32>
    %c31 = arith.constant 31 : index
    %230 = memref.load %arg4[%c31] : memref<32xf32, #tpu.memory_space<smem>>
    %231 = vector.broadcast %230 : f32 to vector<8x512xf32>
    %232 = arith.mulf %91, %231 : vector<8x512xf32>
    %233 = arith.addf %229, %232 : vector<8x512xf32>
    %c3_42 = arith.constant 3 : index
    %234 = memref.load %arg5[%c3_42] : memref<4xf32, #tpu.memory_space<smem>>
    %235 = vector.broadcast %234 : f32 to vector<8x512xf32>
    %236 = arith.addf %233, %235 : vector<8x512xf32>
    %c3_43 = arith.constant 3 : index
    %c0_44 = arith.constant 0 : index
    %c0_45 = arith.constant 0 : index
    %237 = vector.load %arg6[%c3_43, %c0_44, %c0_45] : memref<4x8x512xf32, #tpu.memory_space<vmem>>, vector<1x8x512xf32>
    %238 = vector.shape_cast %237 : vector<1x8x512xf32> to vector<8x512xf32>
    %239 = vector.shape_cast %236 : vector<8x512xf32> to vector<1x8x512xf32>
    tpu.vector_store %arg6[%c3_43, %c0_44, %c0_45], %239 {strides = array<i32>} : memref<4x8x512xf32, #tpu.memory_space<vmem>>, vector<1x8x512xf32>,
    return
  }
  func.func @transform_0(%arg0: i32) -> (i32, i32, i32) {
    %c0_i32 = arith.constant 0 : i32
    %c0_i32_0 = arith.constant 0 : i32
    %c0_i32_1 = arith.constant 0 : i32
    return %c0_i32, %arg0, %c0_i32_0 : i32, i32, i32
  }
  func.func @transform_1(%arg0: i32) -> i32 {
    %c0_i32 = arith.constant 0 : i32
    %c0_i32_0 = arith.constant 0 : i32
    return %c0_i32 : i32
  }
  func.func @transform_2(%arg0: i32) -> i32 {
    %c0_i32 = arith.constant 0 : i32
    %c0_i32_0 = arith.constant 0 : i32
    return %c0_i32 : i32
  }
  func.func @transform_3(%arg0: i32) -> i32 {
    %c0_i32 = arith.constant 0 : i32
    %c0_i32_0 = arith.constant 0 : i32
    return %c0_i32 : i32
  }
  func.func @transform_4(%arg0: i32) -> i32 {
    %c0_i32 = arith.constant 0 : i32
    %c0_i32_0 = arith.constant 0 : i32
    return %c0_i32 : i32
  }
  func.func @transform_5(%arg0: i32) -> (i32, i32, i32) {
    %c0_i32 = arith.constant 0 : i32
    %c0_i32_0 = arith.constant 0 : i32
    %c0_i32_1 = arith.constant 0 : i32
    return %c0_i32, %arg0, %c0_i32_0 : i32, i32, i32
  }
}

</mosaic_0001>

<llo_original>
// kernel: tpu_custom_call.1
$region0: #{tpu_custom_call.1}
  #allocation0 [shape = 'u32[]', space=smem, size = 0x4, offset = 0x4, fixed_abs, tag = 'smem constant byte address 0x4 - core index']
  #allocation1 [shape = 'u32[144,128]{1,0:T(1,128)}', space=vmem, size = 0x12000, scoped, tag = 'internal scratch']
  %s0 = inlined_call_operand.hbm [shape: f32[2,16,512], index: 0, kind: input, shape index: {}]
  %s1 = inlined_call_operand.vmem [shape: f32[16], index: 1, kind: input, shape index: {}]
  %s2 = inlined_call_operand.vmem [shape: f32[8], index: 2, kind: input, shape index: {}]
  %s3 = inlined_call_operand.vmem [shape: f32[32], index: 3, kind: input, shape index: {}]
  %s4 = inlined_call_operand.vmem [shape: f32[4], index: 4, kind: input, shape index: {}]
  %s5 = inlined_call_operand.hbm [shape: f32[4,16,512], index: 5, kind: output, shape index: {}]
  %s6 = sld [smem:[#allocation0]]
  $region73: #{tpu_custom_call.1} parent=0
    _
  %s8 = ssub.s32 1, %s6
  %s9 = scalar_select 0, %s8, %s6
  $region1: #{tpu_custom_call.1} parent=0
    #allocation2 [shape = 'u8[65536]{0}', space=vmem, size = 0x10000, scoped, tag = 'input window, operand 0']
    #allocation3 [shape = 's32[2]{0}', space=sflag, size = 0x8, scoped, tag = 'scoped memory for tpu_custom_call.1']
    #allocation4 [shape = 's32[2]{0}', space=sflag, size = 0x8, scoped, tag = 'scoped memory for tpu_custom_call.1']
    #allocation5 [shape = 's32[2]{0}', space=sflag, size = 0x8, scoped, tag = 'scoped memory for tpu_custom_call.1']
    #allocation6 [shape = 'u8[512]{0}', space=smem, size = 0x200, scoped, tag = 'input window, operand 1, single buffered']
    #allocation7 [shape = 'u8[512]{0}', space=smem, size = 0x200, scoped, tag = 'input window, operand 2, single buffered']
    #allocation8 [shape = 's32[1]{0}', space=sflag, size = 0x4, scoped, tag = 'scoped memory for tpu_custom_call.1']
    #allocation9 [shape = 'u8[512]{0}', space=smem, size = 0x200, scoped, tag = 'input window, operand 3, single buffered']
    #allocation10 [shape = 'u8[512]{0}', space=smem, size = 0x200, scoped, tag = 'input window, operand 4, single buffered']
    #allocation11 [shape = 's32[1]{0}', space=sflag, size = 0x4, scoped, tag = 'scoped memory for tpu_custom_call.1']
    #allocation12 [shape = 'u8[131072]{0}', space=vmem, size = 0x20000, scoped, tag = 'output window, operand 0']
    %10 = vsyncpa [#allocation3], 0
    %s11 = scalar_lea.sflag [#allocation3], 1
    %12 = vsyncpa %s11, 0
    %13 = vsyncpa [#allocation5], 0
    %14 = vsyncpa [#allocation8], 0
    %15 = vsyncpa [#allocation11], 0
    %16 = vsyncpa [#allocation4], 0
    %s17 = scalar_lea.sflag [#allocation4], 1
    %18 = vsyncpa %s17, 0
    loop: start=0, step=1, limit=4
    $region2: #{tpu_custom_call.1} parent=1 // loop_pre_header
      _
    $region3: #{tpu_custom_call.1} parent=1 // loop_header
      %s20 = sphi 0, %s24
      %p21 = scmp.ge.s32.totalorder %s20, 4
      %s30 = sphi 0, %s32
      %s33 = sphi 0, %s30
      %s34 = sphi 0, %s33
      %s50 = sphi 0, %s34
      %s54 = sphi 0, %s54
      %s56 = sphi 0, %s54
      %s57 = sphi 0, %s56
      %s71 = sphi 0, %s57
      %s75 = sphi 0, %s75
      %s77 = sphi 0, %s75
      %s78 = sphi 0, %s77
      %s92 = sphi 0, %s78
      %s96 = sphi 0, %s96
      %s98 = sphi 0, %s96
      %s99 = sphi 0, %s98
      %s113 = sphi 0, %s99
      %s117 = sphi 0, %s117
      %s119 = sphi 0, %s117
      %s120 = sphi 0, %s119
      %s134 = sphi 0, %s120
      %s140 = sphi 0, %s142
      %s143 = sphi 0, %s140
      %s144 = sphi 0, %s143
      %s160 = sphi 0, %s144
    $region4: #{tpu_custom_call.1} parent=1 // loop_header_branch
      %23 = sbr.rel (%p21) target = $region8
    $region5: #{tpu_custom_call.1} parent=1 // loop_body
      %s25 = ssub.s32 %s20, 1
      %s26 = ssub.s32 %s20, 2
      %s27 = sadd.s32 %s20, 1
      %s28 = ssub.s32 %s20, %s27
      %p29 = scmp.eq.s32.totalorder %s28, 0
      %s31 = sadd.s32 %s30, 1
      %s32 = scalar_select %p29, %s30, %s31
      %p35 = pneg %p29
      %p36 = scmp.eq.s32.totalorder %s20, 1
      %p37 = por %p35, %p36
      %p38 = scmp.ne.s32.totalorder %s30, %s33
      %p39 = scmp.eq.s32.totalorder %s20, 0
      %p40 = por %p38, %p39
      %p41 = scmp.ne.s32.totalorder %s30, %s33
      %p42 = scmp.eq.s32.totalorder %s25, 1
      %p43 = por %p41, %p42
      %p44 = scmp.ne.s32.totalorder %s33, %s34
      %p45 = scmp.eq.s32.totalorder %s25, 0
      %p46 = por %p44, %p45
      %p47 = scmp.ne.s32.totalorder %s33, %s34
      %p48 = scmp.eq.s32.totalorder %s26, 1
      %p49 = por %p47, %p48
      %p51 = scmp.ne.s32.totalorder %s34, %s50
      %p52 = scmp.eq.s32.totalorder %s26, 0
      %p53 = por %p51, %p52
      %s55 = sadd.s32 %s54, 1
      %p58 = scmp.eq.s32.totalorder %s20, 1
      %p59 = scmp.ne.s32.totalorder %s54, %s56
      %p60 = scmp.eq.s32.totalorder %s20, 0
      %p61 = por %p59, %p60
      %p62 = scmp.ne.s32.totalorder %s54, %s56
      %p63 = scmp.eq.s32.totalorder %s25, 1
      %p64 = por %p62, %p63
      %p65 = scmp.ne.s32.totalorder %s56, %s57
      %p66 = scmp.eq.s32.totalorder %s25, 0
      %p67 = por %p65, %p66
      %p68 = scmp.ne.s32.totalorder %s56, %s57
      %p69 = scmp.eq.s32.totalorder %s26, 1
      %p70 = por %p68, %p69
      %p72 = scmp.ne.s32.totalorder %s57, %s71
      %p73 = scmp.eq.s32.totalorder %s26, 0
      %p74 = por %p72, %p73
      %s76 = sadd.s32 %s75, 1
      %p79 = scmp.eq.s32.totalorder %s20, 1
      %p80 = scmp.ne.s32.totalorder %s75, %s77
      %p81 = scmp.eq.s32.totalorder %s20, 0
      %p82 = por %p80, %p81
      %p83 = scmp.ne.s32.totalorder %s75, %s77
      %p84 = scmp.eq.s32.totalorder %s25, 1
      %p85 = por %p83, %p84
      %p86 = scmp.ne.s32.totalorder %s77, %s78
      %p87 = scmp.eq.s32.totalorder %s25, 0
      %p88 = por %p86, %p87
      %p89 = scmp.ne.s32.totalorder %s77, %s78
      %p90 = scmp.eq.s32.totalorder %s26, 1
      %p91 = por %p89, %p90
      %p93 = scmp.ne.s32.totalorder %s78, %s92
      %p94 = scmp.eq.s32.totalorder %s26, 0
      %p95 = por %p93, %p94
      %s97 = sadd.s32 %s96, 1
      %p100 = scmp.eq.s32.totalorder %s20, 1
      %p101 = scmp.ne.s32.totalorder %s96, %s98
      %p102 = scmp.eq.s32.totalorder %s20, 0
      %p103 = por %p101, %p102
      %p104 = scmp.ne.s32.totalorder %s96, %s98
      %p105 = scmp.eq.s32.totalorder %s25, 1
      %p106 = por %p104, %p105
      %p107 = scmp.ne.s32.totalorder %s98, %s99
      %p108 = scmp.eq.s32.totalorder %s25, 0
      %p109 = por %p107, %p108
      %p110 = scmp.ne.s32.totalorder %s98, %s99
      %p111 = scmp.eq.s32.totalorder %s26, 1
      %p112 = por %p110, %p111
      %p114 = scmp.ne.s32.totalorder %s99, %s113
      %p115 = scmp.eq.s32.totalorder %s26, 0
      %p116 = por %p114, %p115
      %s118 = sadd.s32 %s117, 1
      %p121 = scmp.eq.s32.totalorder %s20, 1
      %p122 = scmp.ne.s32.totalorder %s117, %s119
      %p123 = scmp.eq.s32.totalorder %s20, 0
      %p124 = por %p122, %p123
      %p125 = scmp.ne.s32.totalorder %s117, %s119
      %p126 = scmp.eq.s32.totalorder %s25, 1
      %p127 = por %p125, %p126
      %p128 = scmp.ne.s32.totalorder %s119, %s120
      %p129 = scmp.eq.s32.totalorder %s25, 0
      %p130 = por %p128, %p129
      %p131 = scmp.ne.s32.totalorder %s119, %s120
      %p132 = scmp.eq.s32.totalorder %s26, 1
      %p133 = por %p131, %p132
      %p135 = scmp.ne.s32.totalorder %s120, %s134
      %p136 = scmp.eq.s32.totalorder %s26, 0
      %p137 = por %p135, %p136
      %s138 = ssub.s32 %s20, %s27
      %p139 = scmp.eq.s32.totalorder %s138, 0
      %s141 = sadd.s32 %s140, 1
      %s142 = scalar_select %p139, %s140, %s141
      %p145 = pneg %p139
      %p146 = scmp.eq.s32.totalorder %s20, 1
      %p147 = por %p145, %p146
      %p148 = scmp.ne.s32.totalorder %s140, %s143
      %p149 = scmp.eq.s32.totalorder %s20, 0
      %p150 = por %p148, %p149
      %p151 = scmp.ne.s32.totalorder %s140, %s143
      %p152 = scmp.eq.s32.totalorder %s25, 1
      %p153 = por %p151, %p152
      %p154 = scmp.ne.s32.totalorder %s143, %s144
      %p155 = scmp.eq.s32.totalorder %s25, 0
      %p156 = por %p154, %p155
      %p157 = scmp.ne.s32.totalorder %s143, %s144
      %p158 = scmp.eq.s32.totalorder %s26, 1
      %p159 = por %p157, %p158
      %p161 = scmp.ne.s32.totalorder %s144, %s160
      %p162 = scmp.eq.s32.totalorder %s26, 0
      %p163 = por %p161, %p162
      %p164 = scmp.le.s32.totalorder 1, %s20
      %p165 = scmp.lt.s32.totalorder %s20, 3
      %p166 = pnand %p164, %p165
      %p167 = pneg %p166
      // Predicated region
      $region9: #{tpu_custom_call.1} parent=5 // pred_check
        _
      $region10: #{tpu_custom_call.1} parent=5 // pred_check_branch
        %169 = sbr.rel (%p166) target = $region12
      $region11: #{tpu_custom_call.1} parent=5 // pred_region
        %s170 = ssub.s32 %s20, 1
        // Predicated region
        $region13: #{tpu_custom_call.1} parent=11 // pred_check
          %p171 = pneg %p67
        $region14: #{tpu_custom_call.1} parent=11 // pred_check_branch
          %173 = sbr.rel (%p171) target = $region16
        $region15: #{tpu_custom_call.1} parent=11 // pred_region
          %s175 = ssub.s32 16, 16
          %176 = vsyncadd [#allocation5], %s175
          %s178 = sshll.u32 %s1, 4
          %s179 = int_to_ptr.vmem [resolvable:$true] %s178
          %181 = dma.vmem_to_smem %s179, 16, [#allocation6], [#allocation5]
        $region16: #{tpu_custom_call.1} parent=11 // pred_fallthru
          _
        // Predicated region
        $region17: #{tpu_custom_call.1} parent=11 // pred_check
          %p182 = pneg %p88
        $region18: #{tpu_custom_call.1} parent=11 // pred_check_branch
          %184 = sbr.rel (%p182) target = $region20
        $region19: #{tpu_custom_call.1} parent=11 // pred_region
          %s186 = ssub.s32 16, 16
          %187 = vsyncadd [#allocation8], %s186
          %s189 = sshll.u32 %s2, 4
          %s190 = int_to_ptr.vmem [resolvable:$true] %s189
          %192 = dma.vmem_to_smem %s190, 16, [#allocation7], [#allocation8]
        $region20: #{tpu_custom_call.1} parent=11 // pred_fallthru
          _
        // Predicated region
        $region21: #{tpu_custom_call.1} parent=11 // pred_check
          %p193 = pneg %p109
        $region22: #{tpu_custom_call.1} parent=11 // pred_check_branch
          %195 = sbr.rel (%p193) target = $region24
        $region23: #{tpu_custom_call.1} parent=11 // pred_region
          %s197 = ssub.s32 16, 16
          %198 = vsyncadd [#allocation8], %s197
          %s200 = sshll.u32 %s3, 4
          %s201 = int_to_ptr.vmem [resolvable:$true] %s200
          %203 = dma.vmem_to_smem %s201, 16, [#allocation9], [#allocation8]
        $region24: #{tpu_custom_call.1} parent=11 // pred_fallthru
          _
        // Predicated region
        $region25: #{tpu_custom_call.1} parent=11 // pred_check
          %p204 = pneg %p130
        $region26: #{tpu_custom_call.1} parent=11 // pred_check_branch
          %206 = sbr.rel (%p204) target = $region28
        $region27: #{tpu_custom_call.1} parent=11 // pred_region
          %s208 = ssub.s32 16, 16
          %209 = vsyncadd [#allocation11], %s208
          %s211 = sshll.u32 %s4, 4
          %s212 = int_to_ptr.vmem [resolvable:$true] %s211
          %214 = dma.vmem_to_smem %s212, 16, [#allocation10], [#allocation11]
        $region28: #{tpu_custom_call.1} parent=11 // pred_fallthru
          _
      $region12: #{tpu_custom_call.1} parent=5 // pred_fallthru
        _
      %p215 = scmp.lt.s32.totalorder %s20, 2
      // Predicated region
      $region29: #{tpu_custom_call.1} parent=5 // pred_check
        %p216 = pneg %p215
      $region30: #{tpu_custom_call.1} parent=5 // pred_check_branch
        %218 = sbr.rel (%p216) target = $region32
      $region31: #{tpu_custom_call.1} parent=5 // pred_region
        // Predicated region
        $region33: #{tpu_custom_call.1} parent=31 // pred_check
          %p219 = pneg %p40
        $region34: #{tpu_custom_call.1} parent=31 // pred_check_branch
          %221 = sbr.rel (%p219) target = $region36
        $region35: #{tpu_custom_call.1} parent=31 // pred_region
          %s222 = sand.u32 %s30, 1
          %s223 = scalar_lea.sflag [#allocation3], %s222
          %s224 = sand.u32 %s30, 1
          %s225 = smul.addr %s224, 64
          %s226 = scalar_lea.vmem [#allocation2], %s225
          %s228 = ssub.s32 1024, 1024
          %229 = vsyncadd %s223, %s228
          %s230 = smul.addr %s20, 4
          %s231 = smul.addr %s230, 128
          %s232 = scalar_lea.hbm %s0, %s231
          %s233 = sshll.u32 %s226, 4
          %s234 = int_to_ptr.vmem [resolvable:$true] %s233
          %239 = dma.hbm_to_vmem [thread:$0]  %s232, 1024, %s234, %s223, 1024, 512, 32
        $region36: #{tpu_custom_call.1} parent=31 // pred_fallthru
          _
      $region32: #{tpu_custom_call.1} parent=5 // pred_fallthru
        _
      %p240 = scmp.le.s32.totalorder 1, %s20
      %p241 = scmp.lt.s32.totalorder %s20, 3
      %p242 = pnand %p240, %p241
      %p243 = pneg %p242
      // Predicated region
      $region37: #{tpu_custom_call.1} parent=5 // pred_check
        _
      $region38: #{tpu_custom_call.1} parent=5 // pred_check_branch
        %245 = sbr.rel (%p242) target = $region40
      $region39: #{tpu_custom_call.1} parent=5 // pred_region
        %s246 = ssub.s32 %s20, 1
        %s247 = sand.u32 %s33, 1
        %s248 = scalar_lea.sflag [#allocation3], %s247
        %s249 = sand.u32 %s33, 1
        %s250 = smul.addr %s249, 64
        %s251 = scalar_lea.vmem [#allocation2], %s250
        // Predicated region
        $region41: #{tpu_custom_call.1} parent=39 // pred_check
          %p252 = pneg %p46
        $region42: #{tpu_custom_call.1} parent=39 // pred_check_branch
          %254 = sbr.rel (%p252) target = $region44
        $region43: #{tpu_custom_call.1} parent=39 // pred_region
          %255 = dma.done %s248, 1024
        $region44: #{tpu_custom_call.1} parent=39 // pred_fallthru
          _
        // Predicated region
        $region45: #{tpu_custom_call.1} parent=39 // pred_check
          %p256 = pneg %p67
        $region46: #{tpu_custom_call.1} parent=39 // pred_check_branch
          %258 = sbr.rel (%p256) target = $region48
        $region47: #{tpu_custom_call.1} parent=39 // pred_region
          %259 = dma.done [#allocation5], 16
        $region48: #{tpu_custom_call.1} parent=39 // pred_fallthru
          _
        // Predicated region
        $region49: #{tpu_custom_call.1} parent=39 // pred_check
          %p260 = pneg %p88
        $region50: #{tpu_custom_call.1} parent=39 // pred_check_branch
          %262 = sbr.rel (%p260) target = $region52
        $region51: #{tpu_custom_call.1} parent=39 // pred_region
          %263 = dma.done [#allocation8], 16
        $region52: #{tpu_custom_call.1} parent=39 // pred_fallthru
          _
        // Predicated region
        $region53: #{tpu_custom_call.1} parent=39 // pred_check
          %p264 = pneg %p109
        $region54: #{tpu_custom_call.1} parent=39 // pred_check_branch
          %266 = sbr.rel (%p264) target = $region56
        $region55: #{tpu_custom_call.1} parent=39 // pred_region
          %267 = dma.done [#allocation8], 16
        $region56: #{tpu_custom_call.1} parent=39 // pred_fallthru
          _
        // Predicated region
        $region57: #{tpu_custom_call.1} parent=39 // pred_check
          %p268 = pneg %p130
        $region58: #{tpu_custom_call.1} parent=39 // pred_check_branch
          %270 = sbr.rel (%p268) target = $region60
        $region59: #{tpu_custom_call.1} parent=39 // pred_region
          %271 = dma.done [#allocation11], 16
        $region60: #{tpu_custom_call.1} parent=39 // pred_fallthru
          _
        %272 = sfence
        %s273 = sand.u32 %s33, 1
        %s274 = scalar_lea.sflag [#allocation3], %s273
        %s275 = sand.u32 %s33, 1
        %s276 = smul.addr %s275, 64
        %s277 = scalar_lea.vmem [#allocation2], %s276
        %p278 = pneg %p46
        %p279 = pneg %p43
        %p280 = pneg %p67
        %p281 = pneg %p64
        %p282 = pneg %p88
        %p283 = pneg %p85
        %p284 = pneg %p109
        %p285 = pneg %p106
        %p286 = pneg %p130
        %p287 = pneg %p127
        %p288 = pneg %p156
        %p289 = pneg %p153
        %s290 = sand.u32 %s143, 1
        %s291 = scalar_lea.sflag [#allocation4], %s290
        %s292 = sand.u32 %s143, 1
        %s293 = smul.addr %s292, 128
        %s294 = scalar_lea.vmem [#allocation12], %s293
        %v295 = vld [vmem:[%s251] sm:$0xff]
        %v296 = vld [vmem:[%s251 + $0x8] sm:$0xff]
        %v297 = vld [vmem:[%s251 + $0x10] sm:$0xff]
        %v298 = vld [vmem:[%s251 + $0x18] sm:$0xff]
        %s299 = scalar_lea.vmem %s251, 32 [#allocation2]
        %v300 = vld [vmem:[%s299] sm:$0xff]
        %v301 = vld [vmem:[%s299 + $0x8] sm:$0xff]
        %v302 = vld [vmem:[%s299 + $0x10] sm:$0xff]
        %v303 = vld [vmem:[%s299 + $0x18] sm:$0xff]
        %s304 = sld [smem:[#allocation6]]
        %v305 = vstv %s304
        %v306 = vmul.f32 %v295, %v305
        %v307 = vmul.f32 %v296, %v305
        %v308 = vmul.f32 %v297, %v305
        %v309 = vmul.f32 %v298, %v305
        %s310 = sld [smem:[#allocation6 + $0x8]]
        %v311 = vstv %s310
        %v312 = vmul.f32 %v300, %v311
        %v313 = vmul.f32 %v301, %v311
        %v314 = vmul.f32 %v302, %v311
        %v315 = vmul.f32 %v303, %v311
        %v316 = vadd.f32 %v306, %v312
        %v317 = vadd.f32 %v307, %v313
        %v318 = vadd.f32 %v308, %v314
        %v319 = vadd.f32 %v309, %v315
        %s320 = sld [smem:[#allocation7]]
        %v321 = vstv %s320
        %v322 = vadd.f32 %v316, %v321
        %v323 = vadd.f32 %v317, %v321
        %v324 = vadd.f32 %v318, %v321
        %v325 = vadd.f32 %v319, %v321
        %v326 = vtanh.pop %v322
        %v327 = vtanh.pop %v323
        %v328 = vtanh.pop %v324
        %v329 = vtanh.pop %v325
        %s330 = sld [smem:[#allocation6 + $0x1]]
        %v331 = vstv %s330
        %v332 = vmul.f32 %v295, %v331
        %v333 = vmul.f32 %v296, %v331
        %v334 = vmul.f32 %v297, %v331
        %v335 = vmul.f32 %v298, %v331
        %s336 = sld [smem:[#allocation6 + $0x9]]
        %v337 = vstv %s336
        %v338 = vmul.f32 %v300, %v337
        %v339 = vmul.f32 %v301, %v337
        %v340 = vmul.f32 %v302, %v337
        %v341 = vmul.f32 %v303, %v337
        %v342 = vadd.f32 %v332, %v338
        %v343 = vadd.f32 %v333, %v339
        %v344 = vadd.f32 %v334, %v340
        %v345 = vadd.f32 %v335, %v341
        %s346 = sld [smem:[#allocation7 + $0x1]]
        %v347 = vstv %s346
        %v348 = vadd.f32 %v342, %v347
        %v349 = vadd.f32 %v343, %v347
        %v350 = vadd.f32 %v344, %v347
        %v351 = vadd.f32 %v345, %v347
        %v352 = vtanh.pop %v348
        %v353 = vtanh.pop %v349
        %v354 = vtanh.pop %v350
        %v355 = vtanh.pop %v351
        %s356 = sld [smem:[#allocation6 + $0x2]]
        %v357 = vstv %s356
        %v358 = vmul.f32 %v295, %v357
        %v359 = vmul.f32 %v296, %v357
        %v360 = vmul.f32 %v297, %v357
        %v361 = vmul.f32 %v298, %v357
        %s362 = sld [smem:[#allocation6 + $0xa]]
        %v363 = vstv %s362
        %v364 = vmul.f32 %v300, %v363
        %v365 = vmul.f32 %v301, %v363
        %v366 = vmul.f32 %v302, %v363
        %v367 = vmul.f32 %v303, %v363
        %v368 = vadd.f32 %v358, %v364
        %v369 = vadd.f32 %v359, %v365
        %v370 = vadd.f32 %v360, %v366
        %v371 = vadd.f32 %v361, %v367
        %s372 = sld [smem:[#allocation7 + $0x2]]
        %v373 = vstv %s372
        %v374 = vadd.f32 %v368, %v373
        %v375 = vadd.f32 %v369, %v373
        %v376 = vadd.f32 %v370, %v373
        %v377 = vadd.f32 %v371, %v373
        %v378 = vtanh.pop %v374
        %v379 = vtanh.pop %v375
        %v380 = vtanh.pop %v376
        %v381 = vtanh.pop %v377
        %s382 = sld [smem:[#allocation6 + $0x3]]
        %v383 = vstv %s382
        %v384 = vmul.f32 %v295, %v383
        %v385 = vmul.f32 %v296, %v383
        %v386 = vmul.f32 %v297, %v383
        %v387 = vmul.f32 %v298, %v383
        %s388 = sld [smem:[#allocation6 + $0xb]]
        %v389 = vstv %s388
        %v390 = vmul.f32 %v300, %v389
        %v391 = vmul.f32 %v301, %v389
        %v392 = vmul.f32 %v302, %v389
        %v393 = vmul.f32 %v303, %v389
        %v394 = vadd.f32 %v384, %v390
        %v395 = vadd.f32 %v385, %v391
        %v396 = vadd.f32 %v386, %v392
        %v397 = vadd.f32 %v387, %v393
        %s398 = sld [smem:[#allocation7 + $0x3]]
        %v399 = vstv %s398
        %v400 = vadd.f32 %v394, %v399
        %v401 = vadd.f32 %v395, %v399
        %v402 = vadd.f32 %v396, %v399
        %v403 = vadd.f32 %v397, %v399
        %v404 = vtanh.pop %v400
        %v405 = vtanh.pop %v401
        %v406 = vtanh.pop %v402
        %v407 = vtanh.pop %v403
        %s408 = sld [smem:[#allocation6 + $0x4]]
        %v409 = vstv %s408
        %v410 = vmul.f32 %v295, %v409
        %v411 = vmul.f32 %v296, %v409
        %v412 = vmul.f32 %v297, %v409
        %v413 = vmul.f32 %v298, %v409
        %s414 = sld [smem:[#allocation6 + $0xc]]
        %v415 = vstv %s414
        %v416 = vmul.f32 %v300, %v415
        %v417 = vmul.f32 %v301, %v415
        %v418 = vmul.f32 %v302, %v415
        %v419 = vmul.f32 %v303, %v415
        %v420 = vadd.f32 %v410, %v416
        %v421 = vadd.f32 %v411, %v417
        %v422 = vadd.f32 %v412, %v418
        %v423 = vadd.f32 %v413, %v419
        %s424 = sld [smem:[#allocation7 + $0x4]]
        %v425 = vstv %s424
        %v426 = vadd.f32 %v420, %v425
        %v427 = vadd.f32 %v421, %v425
        %v428 = vadd.f32 %v422, %v425
        %v429 = vadd.f32 %v423, %v425
        %v430 = vtanh.pop %v426
        %v431 = vtanh.pop %v427
        %v432 = vtanh.pop %v428
        %v433 = vtanh.pop %v429
        %s434 = sld [smem:[#allocation6 + $0x5]]
        %v435 = vstv %s434
        %v436 = vmul.f32 %v295, %v435
        %v437 = vmul.f32 %v296, %v435
        %v438 = vmul.f32 %v297, %v435
        %v439 = vmul.f32 %v298, %v435
        %s440 = sld [smem:[#allocation6 + $0xd]]
        %v441 = vstv %s440
        %v442 = vmul.f32 %v300, %v441
        %v443 = vmul.f32 %v301, %v441
        %v444 = vmul.f32 %v302, %v441
        %v445 = vmul.f32 %v303, %v441
        %v446 = vadd.f32 %v436, %v442
        %v447 = vadd.f32 %v437, %v443
        %v448 = vadd.f32 %v438, %v444
        %v449 = vadd.f32 %v439, %v445
        %s450 = sld [smem:[#allocation7 + $0x5]]
        %v451 = vstv %s450
        %v452 = vadd.f32 %v446, %v451
        %v453 = vadd.f32 %v447, %v451
        %v454 = vadd.f32 %v448, %v451
        %v455 = vadd.f32 %v449, %v451
        %v456 = vtanh.pop %v452
        %v457 = vtanh.pop %v453
        %v458 = vtanh.pop %v454
        %v459 = vtanh.pop %v455
        %s460 = sld [smem:[#allocation6 + $0x6]]
        %v461 = vstv %s460
        %v462 = vmul.f32 %v295, %v461
        %v463 = vmul.f32 %v296, %v461
        %v464 = vmul.f32 %v297, %v461
        %v465 = vmul.f32 %v298, %v461
        %s466 = sld [smem:[#allocation6 + $0xe]]
        %v467 = vstv %s466
        %v468 = vmul.f32 %v300, %v467
        %v469 = vmul.f32 %v301, %v467
        %v470 = vmul.f32 %v302, %v467
        %v471 = vmul.f32 %v303, %v467
        %v472 = vadd.f32 %v462, %v468
        %v473 = vadd.f32 %v463, %v469
        %v474 = vadd.f32 %v464, %v470
        %v475 = vadd.f32 %v465, %v471
        %s476 = sld [smem:[#allocation7 + $0x6]]
        %v477 = vstv %s476
        %v478 = vadd.f32 %v472, %v477
        %v479 = vadd.f32 %v473, %v477
        %v480 = vadd.f32 %v474, %v477
        %v481 = vadd.f32 %v475, %v477
        %v482 = vtanh.pop %v478
        %v483 = vtanh.pop %v479
        %v484 = vtanh.pop %v480
        %v485 = vtanh.pop %v481
        %s486 = sld [smem:[#allocation6 + $0x7]]
        %v487 = vstv %s486
        %v488 = vmul.f32 %v295, %v487
        %v489 = vmul.f32 %v296, %v487
        %v490 = vmul.f32 %v297, %v487
        %v491 = vmul.f32 %v298, %v487
        %s492 = sld [smem:[#allocation6 + $0xf]]
        %v493 = vstv %s492
        %v494 = vmul.f32 %v300, %v493
        %v495 = vmul.f32 %v301, %v493
        %v496 = vmul.f32 %v302, %v493
        %v497 = vmul.f32 %v303, %v493
        %v498 = vadd.f32 %v488, %v494
        %v499 = vadd.f32 %v489, %v495
        %v500 = vadd.f32 %v490, %v496
        %v501 = vadd.f32 %v491, %v497
        %s502 = sld [smem:[#allocation7 + $0x7]]
        %v503 = vstv %s502
        %v504 = vadd.f32 %v498, %v503
        %v505 = vadd.f32 %v499, %v503
        %v506 = vadd.f32 %v500, %v503
        %v507 = vadd.f32 %v501, %v503
        %v508 = vtanh.pop %v504
        %v509 = vtanh.pop %v505
        %v510 = vtanh.pop %v506
        %v511 = vtanh.pop %v507
        %s512 = sld [smem:[#allocation9]]
        %v513 = vstv %s512
        %v514 = vmul.f32 %v326, %v513
        %v515 = vmul.f32 %v327, %v513
        %v516 = vmul.f32 %v328, %v513
        %v517 = vmul.f32 %v329, %v513
        %s518 = sld [smem:[#allocation9 + $0x4]]
        %v519 = vstv %s518
        %v520 = vmul.f32 %v352, %v519
        %v521 = vmul.f32 %v353, %v519
        %v522 = vmul.f32 %v354, %v519
        %v523 = vmul.f32 %v355, %v519
        %v524 = vadd.f32 %v514, %v520
        %v525 = vadd.f32 %v515, %v521
        %v526 = vadd.f32 %v516, %v522
        %v527 = vadd.f32 %v517, %v523
        %s528 = sld [smem:[#allocation9 + $0x8]]
        %v529 = vstv %s528
        %v530 = vmul.f32 %v378, %v529
        %v531 = vmul.f32 %v379, %v529
        %v532 = vmul.f32 %v380, %v529
        %v533 = vmul.f32 %v381, %v529
        %v534 = vadd.f32 %v524, %v530
        %v535 = vadd.f32 %v525, %v531
        %v536 = vadd.f32 %v526, %v532
        %v537 = vadd.f32 %v527, %v533
        %s538 = sld [smem:[#allocation9 + $0xc]]
        %v539 = vstv %s538
        %v540 = vmul.f32 %v404, %v539
        %v541 = vmul.f32 %v405, %v539
        %v542 = vmul.f32 %v406, %v539
        %v543 = vmul.f32 %v407, %v539
        %v544 = vadd.f32 %v534, %v540
        %v545 = vadd.f32 %v535, %v541
        %v546 = vadd.f32 %v536, %v542
        %v547 = vadd.f32 %v537, %v543
        %s548 = sld [smem:[#allocation9 + $0x10]]
        %v549 = vstv %s548
        %v550 = vmul.f32 %v430, %v549
        %v551 = vmul.f32 %v431, %v549
        %v552 = vmul.f32 %v432, %v549
        %v553 = vmul.f32 %v433, %v549
        %v554 = vadd.f32 %v544, %v550
        %v555 = vadd.f32 %v545, %v551
        %v556 = vadd.f32 %v546, %v552
        %v557 = vadd.f32 %v547, %v553
        %s558 = sld [smem:[#allocation9 + $0x14]]
        %v559 = vstv %s558
        %v560 = vmul.f32 %v456, %v559
        %v561 = vmul.f32 %v457, %v559
        %v562 = vmul.f32 %v458, %v559
        %v563 = vmul.f32 %v459, %v559
        %v564 = vadd.f32 %v554, %v560
        %v565 = vadd.f32 %v555, %v561
        %v566 = vadd.f32 %v556, %v562
        %v567 = vadd.f32 %v557, %v563
        %s568 = sld [smem:[#allocation9 + $0x18]]
        %v569 = vstv %s568
        %v570 = vmul.f32 %v482, %v569
        %v571 = vmul.f32 %v483, %v569
        %v572 = vmul.f32 %v484, %v569
        %v573 = vmul.f32 %v485, %v569
        %v574 = vadd.f32 %v564, %v570
        %v575 = vadd.f32 %v565, %v571
        %v576 = vadd.f32 %v566, %v572
        %v577 = vadd.f32 %v567, %v573
        %s578 = sld [smem:[#allocation9 + $0x1c]]
        %v579 = vstv %s578
        %v580 = vmul.f32 %v508, %v579
        %v581 = vmul.f32 %v509, %v579
        %v582 = vmul.f32 %v510, %v579
        %v583 = vmul.f32 %v511, %v579
        %v584 = vadd.f32 %v574, %v580
        %v585 = vadd.f32 %v575, %v581
        %v586 = vadd.f32 %v576, %v582
        %v587 = vadd.f32 %v577, %v583
        %s588 = sld [smem:[#allocation10]]
        %v589 = vstv %s588
        %v590 = vadd.f32 %v584, %v589
        %v591 = vadd.f32 %v585, %v589
        %v592 = vadd.f32 %v586, %v589
        %v593 = vadd.f32 %v587, %v589
        %594 = vst [vmem:[%s294] sm:$0xff] %v590
        %595 = vst [vmem:[%s294 + $0x8] sm:$0xff] %v591
        %596 = vst [vmem:[%s294 + $0x10] sm:$0xff] %v592
        %597 = vst [vmem:[%s294 + $0x18] sm:$0xff] %v593
        %s598 = sld [smem:[#allocation9 + $0x1]]
        %v599 = vstv %s598
        %v600 = vmul.f32 %v326, %v599
        %v601 = vmul.f32 %v327, %v599
        %v602 = vmul.f32 %v328, %v599
        %v603 = vmul.f32 %v329, %v599
        %s604 = sld [smem:[#allocation9 + $0x5]]
        %v605 = vstv %s604
        %v606 = vmul.f32 %v352, %v605
        %v607 = vmul.f32 %v353, %v605
        %v608 = vmul.f32 %v354, %v605
        %v609 = vmul.f32 %v355, %v605
        %v610 = vadd.f32 %v600, %v606
        %v611 = vadd.f32 %v601, %v607
        %v612 = vadd.f32 %v602, %v608
        %v613 = vadd.f32 %v603, %v609
        %s614 = sld [smem:[#allocation9 + $0x9]]
        %v615 = vstv %s614
        %v616 = vmul.f32 %v378, %v615
        %v617 = vmul.f32 %v379, %v615
        %v618 = vmul.f32 %v380, %v615
        %v619 = vmul.f32 %v381, %v615
        %v620 = vadd.f32 %v610, %v616
        %v621 = vadd.f32 %v611, %v617
        %v622 = vadd.f32 %v612, %v618
        %v623 = vadd.f32 %v613, %v619
        %s624 = sld [smem:[#allocation9 + $0xd]]
        %v625 = vstv %s624
        %v626 = vmul.f32 %v404, %v625
        %v627 = vmul.f32 %v405, %v625
        %v628 = vmul.f32 %v406, %v625
        %v629 = vmul.f32 %v407, %v625
        %v630 = vadd.f32 %v620, %v626
        %v631 = vadd.f32 %v621, %v627
        %v632 = vadd.f32 %v622, %v628
        %v633 = vadd.f32 %v623, %v629
        %s634 = sld [smem:[#allocation9 + $0x11]]
        %v635 = vstv %s634
        %v636 = vmul.f32 %v430, %v635
        %v637 = vmul.f32 %v431, %v635
        %v638 = vmul.f32 %v432, %v635
        %v639 = vmul.f32 %v433, %v635
        %v640 = vadd.f32 %v630, %v636
        %v641 = vadd.f32 %v631, %v637
        %v642 = vadd.f32 %v632, %v638
        %v643 = vadd.f32 %v633, %v639
        %s644 = sld [smem:[#allocation9 + $0x15]]
        %v645 = vstv %s644
        %v646 = vmul.f32 %v456, %v645
        %v647 = vmul.f32 %v457, %v645
        %v648 = vmul.f32 %v458, %v645
        %v649 = vmul.f32 %v459, %v645
        %v650 = vadd.f32 %v640, %v646
        %v651 = vadd.f32 %v641, %v647
        %v652 = vadd.f32 %v642, %v648
        %v653 = vadd.f32 %v643, %v649
        %s654 = sld [smem:[#allocation9 + $0x19]]
        %v655 = vstv %s654
        %v656 = vmul.f32 %v482, %v655
        %v657 = vmul.f32 %v483, %v655
        %v658 = vmul.f32 %v484, %v655
        %v659 = vmul.f32 %v485, %v655
        %v660 = vadd.f32 %v650, %v656
        %v661 = vadd.f32 %v651, %v657
        %v662 = vadd.f32 %v652, %v658
        %v663 = vadd.f32 %v653, %v659
        %s664 = sld [smem:[#allocation9 + $0x1d]]
        %v665 = vstv %s664
        %v666 = vmul.f32 %v508, %v665
        %v667 = vmul.f32 %v509, %v665
        %v668 = vmul.f32 %v510, %v665
        %v669 = vmul.f32 %v511, %v665
        %v670 = vadd.f32 %v660, %v666
        %v671 = vadd.f32 %v661, %v667
        %v672 = vadd.f32 %v662, %v668
        %v673 = vadd.f32 %v663, %v669
        %s674 = sld [smem:[#allocation10 + $0x1]]
        %v675 = vstv %s674
        %v676 = vadd.f32 %v670, %v675
        %v677 = vadd.f32 %v671, %v675
        %v678 = vadd.f32 %v672, %v675
        %v679 = vadd.f32 %v673, %v675
        %s680 = scalar_lea.vmem %s294, 32 [#allocation12]
        %681 = vst [vmem:[%s680] sm:$0xff] %v676
        %682 = vst [vmem:[%s680 + $0x8] sm:$0xff] %v677
        %683 = vst [vmem:[%s680 + $0x10] sm:$0xff] %v678
        %684 = vst [vmem:[%s680 + $0x18] sm:$0xff] %v679
        %s685 = sld [smem:[#allocation9 + $0x2]]
        %v686 = vstv %s685
        %v687 = vmul.f32 %v326, %v686
        %v688 = vmul.f32 %v327, %v686
        %v689 = vmul.f32 %v328, %v686
        %v690 = vmul.f32 %v329, %v686
        %s691 = sld [smem:[#allocation9 + $0x6]]
        %v692 = vstv %s691
        %v693 = vmul.f32 %v352, %v692
        %v694 = vmul.f32 %v353, %v692
        %v695 = vmul.f32 %v354, %v692
        %v696 = vmul.f32 %v355, %v692
        %v697 = vadd.f32 %v687, %v693
        %v698 = vadd.f32 %v688, %v694
        %v699 = vadd.f32 %v689, %v695
        %v700 = vadd.f32 %v690, %v696
        %s701 = sld [smem:[#allocation9 + $0xa]]
        %v702 = vstv %s701
        %v703 = vmul.f32 %v378, %v702
        %v704 = vmul.f32 %v379, %v702
        %v705 = vmul.f32 %v380, %v702
        %v706 = vmul.f32 %v381, %v702
        %v707 = vadd.f32 %v697, %v703
        %v708 = vadd.f32 %v698, %v704
        %v709 = vadd.f32 %v699, %v705
        %v710 = vadd.f32 %v700, %v706
        %s711 = sld [smem:[#allocation9 + $0xe]]
        %v712 = vstv %s711
        %v713 = vmul.f32 %v404, %v712
        %v714 = vmul.f32 %v405, %v712
        %v715 = vmul.f32 %v406, %v712
        %v716 = vmul.f32 %v407, %v712
        %v717 = vadd.f32 %v707, %v713
        %v718 = vadd.f32 %v708, %v714
        %v719 = vadd.f32 %v709, %v715
        %v720 = vadd.f32 %v710, %v716
        %s721 = sld [smem:[#allocation9 + $0x12]]
        %v722 = vstv %s721
        %v723 = vmul.f32 %v430, %v722
        %v724 = vmul.f32 %v431, %v722
        %v725 = vmul.f32 %v432, %v722
        %v726 = vmul.f32 %v433, %v722
        %v727 = vadd.f32 %v717, %v723
        %v728 = vadd.f32 %v718, %v724
        %v729 = vadd.f32 %v719, %v725
        %v730 = vadd.f32 %v720, %v726
        %s731 = sld [smem:[#allocation9 + $0x16]]
        %v732 = vstv %s731
        %v733 = vmul.f32 %v456, %v732
        %v734 = vmul.f32 %v457, %v732
        %v735 = vmul.f32 %v458, %v732
        %v736 = vmul.f32 %v459, %v732
        %v737 = vadd.f32 %v727, %v733
        %v738 = vadd.f32 %v728, %v734
        %v739 = vadd.f32 %v729, %v735
        %v740 = vadd.f32 %v730, %v736
        %s741 = sld [smem:[#allocation9 + $0x1a]]
        %v742 = vstv %s741
        %v743 = vmul.f32 %v482, %v742
        %v744 = vmul.f32 %v483, %v742
        %v745 = vmul.f32 %v484, %v742
        %v746 = vmul.f32 %v485, %v742
        %v747 = vadd.f32 %v737, %v743
        %v748 = vadd.f32 %v738, %v744
        %v749 = vadd.f32 %v739, %v745
        %v750 = vadd.f32 %v740, %v746
        %s751 = sld [smem:[#allocation9 + $0x1e]]
        %v752 = vstv %s751
        %v753 = vmul.f32 %v508, %v752
        %v754 = vmul.f32 %v509, %v752
        %v755 = vmul.f32 %v510, %v752
        %v756 = vmul.f32 %v511, %v752
        %v757 = vadd.f32 %v747, %v753
        %v758 = vadd.f32 %v748, %v754
        %v759 = vadd.f32 %v749, %v755
        %v760 = vadd.f32 %v750, %v756
        %s761 = sld [smem:[#allocation10 + $0x2]]
        %v762 = vstv %s761
        %v763 = vadd.f32 %v757, %v762
        %v764 = vadd.f32 %v758, %v762
        %v765 = vadd.f32 %v759, %v762
        %v766 = vadd.f32 %v760, %v762
        %s767 = scalar_lea.vmem %s294, 64 [#allocation12]
        %768 = vst [vmem:[%s767] sm:$0xff] %v763
        %769 = vst [vmem:[%s767 + $0x8] sm:$0xff] %v764
        %770 = vst [vmem:[%s767 + $0x10] sm:$0xff] %v765
        %771 = vst [vmem:[%s767 + $0x18] sm:$0xff] %v766
        %s772 = sld [smem:[#allocation9 + $0x3]]
        %v773 = vstv %s772
        %v774 = vmul.f32 %v326, %v773
        %v775 = vmul.f32 %v327, %v773
        %v776 = vmul.f32 %v328, %v773
        %v777 = vmul.f32 %v329, %v773
        %s778 = sld [smem:[#allocation9 + $0x7]]
        %v779 = vstv %s778
        %v780 = vmul.f32 %v352, %v779
        %v781 = vmul.f32 %v353, %v779
        %v782 = vmul.f32 %v354, %v779
        %v783 = vmul.f32 %v355, %v779
        %v784 = vadd.f32 %v774, %v780
        %v785 = vadd.f32 %v775, %v781
        %v786 = vadd.f32 %v776, %v782
        %v787 = vadd.f32 %v777, %v783
        %s788 = sld [smem:[#allocation9 + $0xb]]
        %v789 = vstv %s788
        %v790 = vmul.f32 %v378, %v789
        %v791 = vmul.f32 %v379, %v789
        %v792 = vmul.f32 %v380, %v789
        %v793 = vmul.f32 %v381, %v789
        %v794 = vadd.f32 %v784, %v790
        %v795 = vadd.f32 %v785, %v791
        %v796 = vadd.f32 %v786, %v792
        %v797 = vadd.f32 %v787, %v793
        %s798 = sld [smem:[#allocation9 + $0xf]]
        %v799 = vstv %s798
        %v800 = vmul.f32 %v404, %v799
        %v801 = vmul.f32 %v405, %v799
        %v802 = vmul.f32 %v406, %v799
        %v803 = vmul.f32 %v407, %v799
        %v804 = vadd.f32 %v794, %v800
        %v805 = vadd.f32 %v795, %v801
        %v806 = vadd.f32 %v796, %v802
        %v807 = vadd.f32 %v797, %v803
        %s808 = sld [smem:[#allocation9 + $0x13]]
        %v809 = vstv %s808
        %v810 = vmul.f32 %v430, %v809
        %v811 = vmul.f32 %v431, %v809
        %v812 = vmul.f32 %v432, %v809
        %v813 = vmul.f32 %v433, %v809
        %v814 = vadd.f32 %v804, %v810
        %v815 = vadd.f32 %v805, %v811
        %v816 = vadd.f32 %v806, %v812
        %v817 = vadd.f32 %v807, %v813
        %s818 = sld [smem:[#allocation9 + $0x17]]
        %v819 = vstv %s818
        %v820 = vmul.f32 %v456, %v819
        %v821 = vmul.f32 %v457, %v819
        %v822 = vmul.f32 %v458, %v819
        %v823 = vmul.f32 %v459, %v819
        %v824 = vadd.f32 %v814, %v820
        %v825 = vadd.f32 %v815, %v821
        %v826 = vadd.f32 %v816, %v822
        %v827 = vadd.f32 %v817, %v823
        %s828 = sld [smem:[#allocation9 + $0x1b]]
        %v829 = vstv %s828
        %v830 = vmul.f32 %v482, %v829
        %v831 = vmul.f32 %v483, %v829
        %v832 = vmul.f32 %v484, %v829
        %v833 = vmul.f32 %v485, %v829
        %v834 = vadd.f32 %v824, %v830
        %v835 = vadd.f32 %v825, %v831
        %v836 = vadd.f32 %v826, %v832
        %v837 = vadd.f32 %v827, %v833
        %s838 = sld [smem:[#allocation9 + $0x1f]]
        %v839 = vstv %s838
        %v840 = vmul.f32 %v508, %v839
        %v841 = vmul.f32 %v509, %v839
        %v842 = vmul.f32 %v510, %v839
        %v843 = vmul.f32 %v511, %v839
        %v844 = vadd.f32 %v834, %v840
        %v845 = vadd.f32 %v835, %v841
        %v846 = vadd.f32 %v836, %v842
        %v847 = vadd.f32 %v837, %v843
        %s848 = sld [smem:[#allocation10 + $0x3]]
        %v849 = vstv %s848
        %v850 = vadd.f32 %v844, %v849
        %v851 = vadd.f32 %v845, %v849
        %v852 = vadd.f32 %v846, %v849
        %v853 = vadd.f32 %v847, %v849
        %s854 = scalar_lea.vmem %s294, 96 [#allocation12]
        %855 = vst [vmem:[%s854] sm:$0xff] %v850
        %856 = vst [vmem:[%s854 + $0x8] sm:$0xff] %v851
        %857 = vst [vmem:[%s854 + $0x10] sm:$0xff] %v852
        %858 = vst [vmem:[%s854 + $0x18] sm:$0xff] %v853
        %s859 = sand.u32 %s143, 1
        %s860 = scalar_lea.sflag [#allocation4], %s859
        %s861 = sand.u32 %s143, 1
        %s862 = smul.addr %s861, 128
        %s863 = scalar_lea.vmem [#allocation12], %s862
        // Predicated region
        $region61: #{tpu_custom_call.1} parent=39 // pred_check
          %p864 = pneg %p153
        $region62: #{tpu_custom_call.1} parent=39 // pred_check_branch
          %866 = sbr.rel (%p864) target = $region64
        $region63: #{tpu_custom_call.1} parent=39 // pred_region
          %s868 = ssub.s32 2048, 2048
          %869 = vsyncadd %s860, %s868
          %s870 = smul.addr %s25, 4
          %s871 = smul.addr %s870, 128
          %s872 = scalar_lea.hbm %s5, %s871
          %s873 = sshll.u32 %s863, 4
          %s874 = int_to_ptr.vmem [resolvable:$true] %s873
          %879 = dma.vmem_to_hbm [thread:$0]  %s874, 2048, %s872, %s860, 512, 1024, 32
        $region64: #{tpu_custom_call.1} parent=39 // pred_fallthru
          _
      $region40: #{tpu_custom_call.1} parent=5 // pred_fallthru
        _
      %p880 = scmp.le.s32.totalorder 2, %s20
      // Predicated region
      $region65: #{tpu_custom_call.1} parent=5 // pred_check
        %p881 = pneg %p880
      $region66: #{tpu_custom_call.1} parent=5 // pred_check_branch
        %883 = sbr.rel (%p881) target = $region68
      $region67: #{tpu_custom_call.1} parent=5 // pred_region
        %s884 = ssub.s32 %s20, 2
        // Predicated region
        $region69: #{tpu_custom_call.1} parent=67 // pred_check
          %p885 = pneg %p159
        $region70: #{tpu_custom_call.1} parent=67 // pred_check_branch
          %887 = sbr.rel (%p885) target = $region72
        $region71: #{tpu_custom_call.1} parent=67 // pred_region
          %s888 = sand.u32 %s144, 1
          %s889 = scalar_lea.sflag [#allocation4], %s888
          %s890 = sand.u32 %s144, 1
          %s891 = smul.addr %s890, 128
          %s892 = scalar_lea.vmem [#allocation12], %s891
          %893 = dma.done %s889, 2048
        $region72: #{tpu_custom_call.1} parent=67 // pred_fallthru
          _
      $region68: #{tpu_custom_call.1} parent=5 // pred_fallthru
        _
    $region6: #{tpu_custom_call.1} parent=1 // loop_footer
      %s24 = sadd.s32 1, %s20
    $region7: #{tpu_custom_call.1} parent=1 // loop_footer_branch
      %19 = sbr.rel target = $region3
    $region8: #{tpu_custom_call.1} parent=1 // loop_exit
      _
    %894 = vsyncpa [#allocation3], 1
    %s895 = scalar_lea.sflag [#allocation3], 1
    %896 = vsyncpa %s895, 1
    %897 = vsyncpa [#allocation4], 1
    %s898 = scalar_lea.sflag [#allocation4], 1
    %899 = vsyncpa %s898, 1
    %900 = vsyncpa [#allocation5], 1
    %s901 = scalar_lea.sflag [#allocation5], 1
    %902 = vsyncpa %s901, 1
    %903 = vsyncpa [#allocation8], 1
    %904 = vsyncpa [#allocation11], 1

</llo_original>
